<compile_context>
chip_gen: v7x
topology: tpu7x:2x2x1
jax: 0.10.0
libtpu: 0.0.40
codegen_flags: <defaults>
</compile_context>

<pallas_src>
import functools
import math

import jax
import jax.numpy as jnp
from jax import lax
from jax.experimental import pallas as pl
from jax.experimental.pallas import tpu as pltpu


def _round_up(x, m):
    return ((x + m - 1) // m) * m


def _largest_divisor_leq(n, cap):
    cap = max(1, min(int(cap), int(n)))
    for d in range(cap, 0, -1):
        if n % d == 0:
            return d
    return 1


# --------------------------------------------------------------------------- #
# Pallas kernel: streamed batch reduction.                                    #
# Per (core p, step k): load a (tb, fK) tile of folded c_i and folded c_j,    #
# mask rows past the end of the batch, and accumulate                         #
#   Gii += ci^T ci,  Gij += ci^T cj,  Gjj += cj^T cj   (MXU, f32 accumulate)  #
#   Si  += sum_rows(ci),  Sj  += sum_rows(cj)          (f32)                  #
# into this core's output blocks (block index constant across k, so they stay #
# resident in VMEM; zero-init at k == 0).                                      #
# --------------------------------------------------------------------------- #
def _gram_kernel(ci_ref, cj_ref, gii_ref, gij_ref, gjj_ref, si_ref, sj_ref, *,
                 tiles_per_core, rows_total, block_rows):
    k = pl.program_id(1)

    @pl.when(k == 0)
    def _init():
        gii_ref[...] = jnp.zeros_like(gii_ref)
        gij_ref[...] = jnp.zeros_like(gij_ref)
        gjj_ref[...] = jnp.zeros_like(gjj_ref)
        si_ref[...] = jnp.zeros_like(si_ref)
        sj_ref[...] = jnp.zeros_like(sj_ref)

    # Ragged / overflow tile handling: zero the rows past the end of the batch
    # for BOTH the Gram accumulation and the column-sum accumulation.
    t = pl.program_id(0) * tiles_per_core + k
    valid = rows_total - t * block_rows            # may be <= 0 (overflow tile)
    row_id = lax.broadcasted_iota(jnp.int32, ci_ref.shape, 0)
    mask = row_id < valid

    xi = ci_ref[...]
    xj = cj_ref[...]
    xi = jnp.where(mask, xi, jnp.zeros_like(xi))
    xj = jnp.where(mask, xj, jnp.zeros_like(xj))

    dn = (((0,), (0,)), ((), ()))                  # contract over the batch rows
    gii_ref[...] += lax.dot_general(xi, xi, dn, preferred_element_type=jnp.float32)
    gij_ref[...] += lax.dot_general(xi, xj, dn, preferred_element_type=jnp.float32)
    gjj_ref[...] += lax.dot_general(xj, xj, dn, preferred_element_type=jnp.float32)

    # TODO(synk): could be folded into the Grams via an appended ones-column if
    # the VPU ever co-saturates with the DMA (review: neutral at current ratios).
    si_ref[...] += jnp.sum(xi.astype(jnp.float32), axis=0, keepdims=True)
    sj_ref[...] += jnp.sum(xj.astype(jnp.float32), axis=0, keepdims=True)


def cluster_loss(c_i, c_j, class_num, temperature, *,
                 stream_dtype=jnp.bfloat16,
                 target_step_bytes=None,
                 num_parallel_blocks=2):
    """ClusterLoss forward.  c_i, c_j: (batch, class_num) soft cluster assignments."""
    assert c_i.shape == c_j.shape and c_i.ndim == 2 and c_i.shape[1] == class_num
    b, k_cls = c_i.shape
    n = 2 * k_cls

    # ---- lane-density fold: (B, K) -> (B/f, f*K); row-major refold, no reorder.
    # Keep f*K <= ~128 (stays HBM-bound even on v5e) and >= 8 rows per folded row.
    f_cap = min(max(1, 128 // k_cls), max(1, b // 8))
    f = _largest_divisor_leq(b, f_cap)
    # TODO(synk): prime-ish batch sizes fall back to f=1 (lane-padded DMAs).
    fk = f * k_cls
    b_folded = b // f

    ci = c_i.astype(stream_dtype).reshape(b_folded, fk)
    cj = c_j.astype(stream_dtype).reshape(b_folded, fk)

    # ---- per-generation VMEM budget and HBM byte target per grid step ----------
    try:
        vmem_cap = int(pltpu.get_tpu_info().vmem_capacity_bytes)
    except Exception:
        vmem_cap = 0
    if vmem_cap < (16 << 20):
        vmem_cap = 64 << 20                        # conservative: v7x per-core VMEM
    budget = min((vmem_cap * 3) // 4, 100 << 20)   # <=48 MiB on v7x, <=96 MiB else
    if target_step_bytes is None:
        # Faster HBM (v7x) wants bigger steps to amortize the ~0.35us/step overhead.
        target_step_bytes = (16 << 20) if vmem_cap <= (64 << 20) else (8 << 20)

    item = jnp.dtype(stream_dtype).itemsize
    lane = max(128, _round_up(fk, 128))            # lane-padded tile width in VMEM
    tb = max(8, int(target_step_bytes) // (2 * lane * item))
    if tb < b_folded:
        tb = max(32, (tb // 32) * 32)              # sublane-friendly for all dtypes
    if tb >= b_folded:
        tb = b_folded                              # single full-extent block

    def vmem_need(rows):
        in_b = 2 * 2 * _round_up(rows, 16) * lane * item           # 2 inputs, 2 buffers
        out_b = 2 * (3 * _round_up(fk, 8) + 2 * 8) * lane * 4      # grams + col sums
        return in_b + out_b + (2 << 20)

    while vmem_need(tb) > budget and tb > 32:
        tb = max(32, ((tb // 2) // 32) * 32)
    vmem_limit = int(min(budget, max(vmem_need(tb), 8 << 20)))

    # ---- grid: (core-parallel split, streamed batch tiles) ---------------------
    tiles_total = pl.cdiv(b_folded, tb)
    n_par = max(1, min(int(num_parallel_blocks), tiles_total))
    tiles_per_core = pl.cdiv(tiles_total, n_par)

    def in_index(p, k):
        t = p * tiles_per_core + k
        return (jnp.minimum(t, tiles_total - 1), 0)   # clamp overflow tiles (masked)

    gram_spec = pl.BlockSpec((None, fk, fk), lambda p, k: (p, 0, 0))
    sum_spec = pl.BlockSpec((None, 1, fk), lambda p, k: (p, 0, 0))

    kernel = functools.partial(
        _gram_kernel,
        tiles_per_core=tiles_per_core,
        rows_total=b_folded,
        block_rows=tb,
    )

    gii, gij, gjj, si, sj = pl.pallas_call(
        kernel,
        out_shape=(
            jax.ShapeDtypeStruct((n_par, fk, fk), jnp.float32),
            jax.ShapeDtypeStruct((n_par, fk, fk), jnp.float32),
            jax.ShapeDtypeStruct((n_par, fk, fk), jnp.float32),
            jax.ShapeDtypeStruct((n_par, 1, fk), jnp.float32),
            jax.ShapeDtypeStruct((n_par, 1, fk), jnp.float32),
        ),
        grid=(n_par, tiles_per_core),
        in_specs=[pl.BlockSpec((tb, fk), in_index),
                  pl.BlockSpec((tb, fk), in_index)],
        out_specs=(gram_spec, gram_spec, gram_spec, sum_spec, sum_spec),
        compiler_params=pltpu.CompilerParams(
            dimension_semantics=("parallel", "arbitrary"),
            vmem_limit_bytes=vmem_limit,
        ),
    )(ci, cj)

    # ---- O(N^2) epilogue in plain JAX (N = 2*class_num is tiny) ----------------
    def unfold_gram(g):
        # sum the partial (per-core) Grams, then sum the f diagonal K x K blocks
        g4 = g.sum(axis=0).reshape(f, k_cls, f, k_cls)
        idx = jnp.arange(f)
        return g4[idx, :, idx, :].sum(axis=0)                       # (K, K)

    g_ii = unfold_gram(gii)
    g_ij = unfold_gram(gij)
    g_jj = unfold_gram(gjj)
    s_i = si.sum(axis=(0, 1)).reshape(f, k_cls).sum(axis=0)         # (K,)
    s_j = sj.sum(axis=(0, 1)).reshape(f, k_cls).sum(axis=0)

    # entropy regularizer (tiny epsilon guards exact-zero cluster mass)
    tiny = jnp.float32(1e-30)
    p_i = s_i / s_i.sum()
    p_j = s_j / s_j.sum()
    ne_loss = (2.0 * math.log(k_cls)
               + jnp.sum(p_i * jnp.log(p_i + tiny))
               + jnp.sum(p_j * jnp.log(p_j + tiny)))

    # cosine similarity between the N cluster vectors, from the Gram blocks
    g = jnp.concatenate(
        [jnp.concatenate([g_ii, g_ij], axis=1),
         jnp.concatenate([g_ij.T, g_jj], axis=1)], axis=0)           # (N, N)
    inv_norm = 1.0 / jnp.sqrt(jnp.maximum(jnp.diagonal(g), 1e-30))
    sim = g * inv_norm[:, None] * inv_norm[None, :] / float(temperature)

    pos = jnp.concatenate([jnp.diagonal(sim, offset=k_cls),
                           jnp.diagonal(sim, offset=-k_cls)])        # (N,)

    # CrossEntropy(reduction='sum')/N with target = positive column; the diagonal
    # is masked out of both the row max and the exp-sum (no cancellation hazard).
    off_diag = ~jnp.eye(n, dtype=bool)
    row_max = jnp.max(jnp.where(off_diag, sim, -jnp.inf), axis=1, keepdims=True)
    se = jnp.sum(jnp.where(off_diag, jnp.exp(sim - row_max), 0.0), axis=1)
    lse = row_max[:, 0] + jnp.log(se)
    ce_loss = jnp.sum(lse - pos) / n

    return ce_loss + ne_loss


def _reference_cluster_loss(c_i, c_j, class_num, temperature):
    # pure-JAX reference mirroring the PyTorch forward
    p_i = c_i.sum(0)
    p_i = p_i / p_i.sum()
    ne_i = math.log(class_num) + (p_i * jnp.log(p_i)).sum()
    p_j = c_j.sum(0)
    p_j = p_j / p_j.sum()
    ne_j = math.log(class_num) + (p_j * jnp.log(p_j)).sum()
    N = 2 * class_num
    c = jnp.concatenate([c_i.T, c_j.T], axis=0)
    cn = c / jnp.linalg.norm(c, axis=1, keepdims=True)
    sim = jnp.matmul(cn, cn.T, precision=jax.lax.Precision.HIGHEST) / temperature
    pos = jnp.concatenate(
        [jnp.diag(sim, k=class_num), jnp.diag(sim, k=-class_num)], axis=0)
    off_diag = ~jnp.eye(N, dtype=bool)
    sim_m = jnp.where(off_diag, sim, -jnp.inf)
    lse = jax.scipy.special.logsumexp(sim_m, axis=1)
    loss = jnp.sum(lse - pos) / N
    return loss + ne_i + ne_j


if __name__ == "__main__":
    key = jax.random.PRNGKey(0)

    # ---------------- small check (module-consistent shapes) -----------------
    class_num = 4
    temperature = 1.0
    batch = 8
    k1, k2, k3, k4 = jax.random.split(key, 4)
    c_i = jax.nn.softmax(jax.random.normal(k1, (batch, class_num), jnp.float32), axis=1)
    c_j = jax.nn.softmax(jax.random.normal(k2, (batch, class_num), jnp.float32), axis=1)
    ref = _reference_cluster_loss(c_i, c_j, class_num, temperature)

    # 1) exactness path: stream / accumulate in f32
    loss_f32 = jax.block_until_ready(
        cluster_loss(c_i, c_j, class_num, temperature, stream_dtype=jnp.float32))
    assert jnp.allclose(loss_f32, ref, atol=1e-4, rtol=1e-4), (loss_f32, ref)

    # 2) perf path: bf16 streaming + bf16 MXU operands, f32 accumulation/epilogue
    loss_bf16 = jax.block_until_ready(
        cluster_loss(c_i, c_j, class_num, temperature))
    assert jnp.allclose(loss_bf16, ref, atol=2e-2, rtol=2e-2), (loss_bf16, ref)

    # ------------- structural check: fold + ragged tile + parallel split ------
    # Small target_step_bytes forces multiple tiles so the lane fold (f=20), the
    # ragged last tile, the overflow-tile clamp and the 2-way parallel axis all run.
    cls2, temp2, batch2 = 6, 0.5, 3000
    d_i = jax.nn.softmax(jax.random.normal(k3, (batch2, cls2), jnp.float32), axis=1)
    d_j = jax.nn.softmax(jax.random.normal(k4, (batch2, cls2), jnp.float32), axis=1)
    ref2 = _reference_cluster_loss(d_i, d_j, cls2, temp2)
    loss2 = jax.block_until_ready(
        cluster_loss(d_i, d_j, cls2, temp2, stream_dtype=jnp.float32,
                     target_step_bytes=16 * 1024))
    assert jnp.allclose(loss2, ref2, atol=1e-3, rtol=1e-3), (loss2, ref2)

    print("KERNEL_OK")
</pallas_src>

<mosaic_0001>
module attributes {stable_mosaic.version = 11 : i64} {
  func.func @_gram_kernel(%arg0: i32, %arg1: i32, %arg2: memref<8x4xf32, #tpu.memory_space<vmem>>, %arg3: memref<8x4xf32, #tpu.memory_space<vmem>>, %arg4: memref<1x4x4xf32, #tpu.memory_space<vmem>>, %arg5: memref<1x4x4xf32, #tpu.memory_space<vmem>>, %arg6: memref<1x4x4xf32, #tpu.memory_space<vmem>>, %arg7: memref<1x1x4xf32, #tpu.memory_space<vmem>>, %arg8: memref<1x1x4xf32, #tpu.memory_space<vmem>>) attributes {dimension_semantics = [#tpu.dimension_semantics<parallel>, #tpu.dimension_semantics<arbitrary>], iteration_bounds = array<i64: 1, 1>, scalar_prefetch = 0 : i64, scratch_operands = 0 : i64, tpu.core_type = #tpu.core_type<tc>, window_params = [{transform_indices = @transform_0, window_bounds = array<i64: 8, 4>}, {transform_indices = @transform_1, window_bounds = array<i64: 8, 4>}, {transform_indices = @transform_2, window_bounds = array<i64: 1, 4, 4>}, {transform_indices = @transform_3, window_bounds = array<i64: 1, 4, 4>}, {transform_indices = @transform_4, window_bounds = array<i64: 1, 4, 4>}, {transform_indices = @transform_5, window_bounds = array<i64: 1, 1, 4>}, {transform_indices = @transform_6, window_bounds = array<i64: 1, 1, 4>}]} {
    %c0_i32 = arith.constant 0 : i32
    %0 = arith.cmpi eq, %arg1, %c0_i32 : i32
    %1 = arith.extui %0 : i1 to i32
    %c0_i32_0 = arith.constant 0 : i32
    %2 = arith.cmpi ne, %1, %c0_i32_0 : i32
    scf.if %2 {
      %cst_41 = arith.constant 0.000000e+00 : f32
      %53 = vector.broadcast %cst_41 : f32 to vector<4x4xf32>
      %c0_42 = arith.constant 0 : index
      %c0_43 = arith.constant 0 : index
      %c0_44 = arith.constant 0 : index
      %54 = vector.load %arg4[%c0_42, %c0_43, %c0_44] : memref<1x4x4xf32, #tpu.memory_space<vmem>>, vector<1x4x4xf32>
      %55 = vector.shape_cast %54 : vector<1x4x4xf32> to vector<4x4xf32>
      %56 = vector.shape_cast %53 : vector<4x4xf32> to vector<1x4x4xf32>
      tpu.vector_store %arg4[%c0_42, %c0_43, %c0_44], %56 {strides = array<i32>} : memref<1x4x4xf32, #tpu.memory_space<vmem>>, vector<1x4x4xf32>,
      %cst_45 = arith.constant 0.000000e+00 : f32
      %57 = vector.broadcast %cst_45 : f32 to vector<4x4xf32>
      %c0_46 = arith.constant 0 : index
      %c0_47 = arith.constant 0 : index
      %c0_48 = arith.constant 0 : index
      %58 = vector.load %arg5[%c0_46, %c0_47, %c0_48] : memref<1x4x4xf32, #tpu.memory_space<vmem>>, vector<1x4x4xf32>
      %59 = vector.shape_cast %58 : vector<1x4x4xf32> to vector<4x4xf32>
      %60 = vector.shape_cast %57 : vector<4x4xf32> to vector<1x4x4xf32>
      tpu.vector_store %arg5[%c0_46, %c0_47, %c0_48], %60 {strides = array<i32>} : memref<1x4x4xf32, #tpu.memory_space<vmem>>, vector<1x4x4xf32>,
      %cst_49 = arith.constant 0.000000e+00 : f32
      %61 = vector.broadcast %cst_49 : f32 to vector<4x4xf32>
      %c0_50 = arith.constant 0 : index
      %c0_51 = arith.constant 0 : index
      %c0_52 = arith.constant 0 : index
      %62 = vector.load %arg6[%c0_50, %c0_51, %c0_52] : memref<1x4x4xf32, #tpu.memory_space<vmem>>, vector<1x4x4xf32>
      %63 = vector.shape_cast %62 : vector<1x4x4xf32> to vector<4x4xf32>
      %64 = vector.shape_cast %61 : vector<4x4xf32> to vector<1x4x4xf32>
      tpu.vector_store %arg6[%c0_50, %c0_51, %c0_52], %64 {strides = array<i32>} : memref<1x4x4xf32, #tpu.memory_space<vmem>>, vector<1x4x4xf32>,
      %cst_53 = arith.constant 0.000000e+00 : f32
      %65 = vector.broadcast %cst_53 : f32 to vector<1x4xf32>
      %c0_54 = arith.constant 0 : index
      %c0_55 = arith.constant 0 : index
      %c0_56 = arith.constant 0 : index
      %66 = vector.load %arg7[%c0_54, %c0_55, %c0_56] : memref<1x1x4xf32, #tpu.memory_space<vmem>>, vector<1x1x4xf32>
      %67 = vector.shape_cast %66 : vector<1x1x4xf32> to vector<1x4xf32>
      %68 = vector.shape_cast %65 : vector<1x4xf32> to vector<1x1x4xf32>
      tpu.vector_store %arg7[%c0_54, %c0_55, %c0_56], %68 {strides = array<i32>} : memref<1x1x4xf32, #tpu.memory_space<vmem>>, vector<1x1x4xf32>,
      %cst_57 = arith.constant 0.000000e+00 : f32
      %69 = vector.broadcast %cst_57 : f32 to vector<1x4xf32>
      %c0_58 = arith.constant 0 : index
      %c0_59 = arith.constant 0 : index
      %c0_60 = arith.constant 0 : index
      %70 = vector.load %arg8[%c0_58, %c0_59, %c0_60] : memref<1x1x4xf32, #tpu.memory_space<vmem>>, vector<1x1x4xf32>
      %71 = vector.shape_cast %70 : vector<1x1x4xf32> to vector<1x4xf32>
      %72 = vector.shape_cast %69 : vector<1x4xf32> to vector<1x1x4xf32>
      tpu.vector_store %arg8[%c0_58, %c0_59, %c0_60], %72 {strides = array<i32>} : memref<1x1x4xf32, #tpu.memory_space<vmem>>, vector<1x1x4xf32>,
    } else {
    }
    %c1_i32 = arith.constant 1 : i32
    %3 = arith.muli %arg0, %c1_i32 : i32
    %4 = arith.addi %3, %arg1 : i32
    %c8_i32 = arith.constant 8 : i32
    %5 = arith.muli %4, %c8_i32 : i32
    %c8_i32_1 = arith.constant 8 : i32
    %6 = arith.subi %c8_i32_1, %5 : i32
    %7 = tpu.iota {dimensions = array<i32: 0>} : vector<8x4xi32>
    %8 = vector.broadcast %6 : i32 to vector<8x4xi32>
    %9 = arith.cmpi slt, %7, %8 : vector<8x4xi32>
    %c0 = arith.constant 0 : index
    %c0_2 = arith.constant 0 : index
    %10 = vector.load %arg2[%c0, %c0_2] : memref<8x4xf32, #tpu.memory_space<vmem>>, vector<8x4xf32>
    %c0_3 = arith.constant 0 : index
    %c0_4 = arith.constant 0 : index
    %11 = vector.load %arg3[%c0_3, %c0_4] : memref<8x4xf32, #tpu.memory_space<vmem>>, vector<8x4xf32>
    %cst = arith.constant 0.000000e+00 : f32
    %12 = vector.broadcast %cst : f32 to vector<8x4xf32>
    %13 = arith.select %9, %10, %12 : vector<8x4xi1>, vector<8x4xf32>
    %cst_5 = arith.constant 0.000000e+00 : f32
    %14 = vector.broadcast %cst_5 : f32 to vector<8x4xf32>
    %15 = arith.select %9, %11, %14 : vector<8x4xi1>, vector<8x4xf32>
    %c0_6 = arith.constant 0 : index
    %c0_7 = arith.constant 0 : index
    %c0_8 = arith.constant 0 : index
    %16 = vector.load %arg4[%c0_6, %c0_7, %c0_8] : memref<1x4x4xf32, #tpu.memory_space<vmem>>, vector<1x4x4xf32>
    %17 = vector.shape_cast %16 : vector<1x4x4xf32> to vector<4x4xf32>
    %cst_9 = arith.constant dense<0.000000e+00> : vector<4x4xf32>
    %18 = tpu.matmul %13, %13, %cst_9 {dimension_numbers = #tpu.dot_dimension_numbers<[0], [0], [1], [1], [0, 1, 1, 1], [], []>} : vector<8x4xf32>, vector<8x4xf32>, vector<4x4xf32> -> vector<4x4xf32>
    %19 = arith.addf %17, %18 : vector<4x4xf32>
    %c0_10 = arith.constant 0 : index
    %c0_11 = arith.constant 0 : index
    %c0_12 = arith.constant 0 : index
    %20 = vector.load %arg4[%c0_10, %c0_11, %c0_12] : memref<1x4x4xf32, #tpu.memory_space<vmem>>, vector<1x4x4xf32>
    %21 = vector.shape_cast %20 : vector<1x4x4xf32> to vector<4x4xf32>
    %22 = vector.shape_cast %19 : vector<4x4xf32> to vector<1x4x4xf32>
    tpu.vector_store %arg4[%c0_10, %c0_11, %c0_12], %22 {strides = array<i32>} : memref<1x4x4xf32, #tpu.memory_space<vmem>>, vector<1x4x4xf32>,
    %c0_13 = arith.constant 0 : index
    %c0_14 = arith.constant 0 : index
    %c0_15 = arith.constant 0 : index
    %23 = vector.load %arg5[%c0_13, %c0_14, %c0_15] : memref<1x4x4xf32, #tpu.memory_space<vmem>>, vector<1x4x4xf32>
    %24 = vector.shape_cast %23 : vector<1x4x4xf32> to vector<4x4xf32>
    %cst_16 = arith.constant dense<0.000000e+00> : vector<4x4xf32>
    %25 = tpu.matmul %13, %15, %cst_16 {dimension_numbers = #tpu.dot_dimension_numbers<[0], [0], [1], [1], [0, 1, 1, 1], [], []>} : vector<8x4xf32>, vector<8x4xf32>, vector<4x4xf32> -> vector<4x4xf32>
    %26 = arith.addf %24, %25 : vector<4x4xf32>
    %c0_17 = arith.constant 0 : index
    %c0_18 = arith.constant 0 : index
    %c0_19 = arith.constant 0 : index
    %27 = vector.load %arg5[%c0_17, %c0_18, %c0_19] : memref<1x4x4xf32, #tpu.memory_space<vmem>>, vector<1x4x4xf32>
    %28 = vector.shape_cast %27 : vector<1x4x4xf32> to vector<4x4xf32>
    %29 = vector.shape_cast %26 : vector<4x4xf32> to vector<1x4x4xf32>
    tpu.vector_store %arg5[%c0_17, %c0_18, %c0_19], %29 {strides = array<i32>} : memref<1x4x4xf32, #tpu.memory_space<vmem>>, vector<1x4x4xf32>,
    %c0_20 = arith.constant 0 : index
    %c0_21 = arith.constant 0 : index
    %c0_22 = arith.constant 0 : index
    %30 = vector.load %arg6[%c0_20, %c0_21, %c0_22] : memref<1x4x4xf32, #tpu.memory_space<vmem>>, vector<1x4x4xf32>
    %31 = vector.shape_cast %30 : vector<1x4x4xf32> to vector<4x4xf32>
    %cst_23 = arith.constant dense<0.000000e+00> : vector<4x4xf32>
    %32 = tpu.matmul %15, %15, %cst_23 {dimension_numbers = #tpu.dot_dimension_numbers<[0], [0], [1], [1], [0, 1, 1, 1], [], []>} : vector<8x4xf32>, vector<8x4xf32>, vector<4x4xf32> -> vector<4x4xf32>
    %33 = arith.addf %31, %32 : vector<4x4xf32>
    %c0_24 = arith.constant 0 : index
    %c0_25 = arith.constant 0 : index
    %c0_26 = arith.constant 0 : index
    %34 = vector.load %arg6[%c0_24, %c0_25, %c0_26] : memref<1x4x4xf32, #tpu.memory_space<vmem>>, vector<1x4x4xf32>
    %35 = vector.shape_cast %34 : vector<1x4x4xf32> to vector<4x4xf32>
    %36 = vector.shape_cast %33 : vector<4x4xf32> to vector<1x4x4xf32>
    tpu.vector_store %arg6[%c0_24, %c0_25, %c0_26], %36 {strides = array<i32>} : memref<1x4x4xf32, #tpu.memory_space<vmem>>, vector<1x4x4xf32>,
    %c0_27 = arith.constant 0 : index
    %c0_28 = arith.constant 0 : index
    %c0_29 = arith.constant 0 : index
    %37 = vector.load %arg7[%c0_27, %c0_28, %c0_29] : memref<1x1x4xf32, #tpu.memory_space<vmem>>, vector<1x1x4xf32>
    %38 = vector.shape_cast %37 : vector<1x1x4xf32> to vector<1x4xf32>
    %cst_30 = arith.constant dense<0.000000e+00> : vector<4xf32>
    %39 = vector.multi_reduction <add>, %13, %cst_30 [0] : vector<8x4xf32> to vector<4xf32>
    %40 = vector.shape_cast %39 : vector<4xf32> to vector<1x4xf32>
    %41 = arith.addf %38, %40 : vector<1x4xf32>
    %c0_31 = arith.constant 0 : index
    %c0_32 = arith.constant 0 : index
    %c0_33 = arith.constant 0 : index
    %42 = vector.load %arg7[%c0_31, %c0_32, %c0_33] : memref<1x1x4xf32, #tpu.memory_space<vmem>>, vector<1x1x4xf32>
    %43 = vector.shape_cast %42 : vector<1x1x4xf32> to vector<1x4xf32>
    %44 = vector.shape_cast %41 : vector<1x4xf32> to vector<1x1x4xf32>
    tpu.vector_store %arg7[%c0_31, %c0_32, %c0_33], %44 {strides = array<i32>} : memref<1x1x4xf32, #tpu.memory_space<vmem>>, vector<1x1x4xf32>,
    %c0_34 = arith.constant 0 : index
    %c0_35 = arith.constant 0 : index
    %c0_36 = arith.constant 0 : index
    %45 = vector.load %arg8[%c0_34, %c0_35, %c0_36] : memref<1x1x4xf32, #tpu.memory_space<vmem>>, vector<1x1x4xf32>
    %46 = vector.shape_cast %45 : vector<1x1x4xf32> to vector<1x4xf32>
    %cst_37 = arith.constant dense<0.000000e+00> : vector<4xf32>
    %47 = vector.multi_reduction <add>, %15, %cst_37 [0] : vector<8x4xf32> to vector<4xf32>
    %48 = vector.shape_cast %47 : vector<4xf32> to vector<1x4xf32>
    %49 = arith.addf %46, %48 : vector<1x4xf32>
    %c0_38 = arith.constant 0 : index
    %c0_39 = arith.constant 0 : index
    %c0_40 = arith.constant 0 : index
    %50 = vector.load %arg8[%c0_38, %c0_39, %c0_40] : memref<1x1x4xf32, #tpu.memory_space<vmem>>, vector<1x1x4xf32>
    %51 = vector.shape_cast %50 : vector<1x1x4xf32> to vector<1x4xf32>
    %52 = vector.shape_cast %49 : vector<1x4xf32> to vector<1x1x4xf32>
    tpu.vector_store %arg8[%c0_38, %c0_39, %c0_40], %52 {strides = array<i32>} : memref<1x1x4xf32, #tpu.memory_space<vmem>>, vector<1x1x4xf32>,
    return
  }
  func.func @transform_0(%arg0: i32, %arg1: i32) -> (i32, i32) {
    %c1_i32 = arith.constant 1 : i32
    %0 = arith.muli %arg0, %c1_i32 : i32
    %1 = arith.addi %0, %arg1 : i32
    %c0_i32 = arith.constant 0 : i32
    %2 = arith.minsi %1, %c0_i32 : i32
    %c0_i32_0 = arith.constant 0 : i32
    %c0_i32_1 = arith.constant 0 : i32
    return %2, %c0_i32_0 : i32, i32
  }
  func.func @transform_1(%arg0: i32, %arg1: i32) -> (i32, i32) {
    %c1_i32 = arith.constant 1 : i32
    %0 = arith.muli %arg0, %c1_i32 : i32
    %1 = arith.addi %0, %arg1 : i32
    %c0_i32 = arith.constant 0 : i32
    %2 = arith.minsi %1, %c0_i32 : i32
    %c0_i32_0 = arith.constant 0 : i32
    %c0_i32_1 = arith.constant 0 : i32
    return %2, %c0_i32_0 : i32, i32
  }
  func.func @transform_2(%arg0: i32, %arg1: i32) -> (i32, i32, i32) {
    %c0_i32 = arith.constant 0 : i32
    %c0_i32_0 = arith.constant 0 : i32
    %c0_i32_1 = arith.constant 0 : i32
    return %arg0, %c0_i32, %c0_i32_0 : i32, i32, i32
  }
  func.func @transform_3(%arg0: i32, %arg1: i32) -> (i32, i32, i32) {
    %c0_i32 = arith.constant 0 : i32
    %c0_i32_0 = arith.constant 0 : i32
    %c0_i32_1 = arith.constant 0 : i32
    return %arg0, %c0_i32, %c0_i32_0 : i32, i32, i32
  }
  func.func @transform_4(%arg0: i32, %arg1: i32) -> (i32, i32, i32) {
    %c0_i32 = arith.constant 0 : i32
    %c0_i32_0 = arith.constant 0 : i32
    %c0_i32_1 = arith.constant 0 : i32
    return %arg0, %c0_i32, %c0_i32_0 : i32, i32, i32
  }
  func.func @transform_5(%arg0: i32, %arg1: i32) -> (i32, i32, i32) {
    %c0_i32 = arith.constant 0 : i32
    %c0_i32_0 = arith.constant 0 : i32
    %c0_i32_1 = arith.constant 0 : i32
    return %arg0, %c0_i32, %c0_i32_0 : i32, i32, i32
  }
  func.func @transform_6(%arg0: i32, %arg1: i32) -> (i32, i32, i32) {
    %c0_i32 = arith.constant 0 : i32
    %c0_i32_0 = arith.constant 0 : i32
    %c0_i32_1 = arith.constant 0 : i32
    return %arg0, %c0_i32, %c0_i32_0 : i32, i32, i32
  }
}

</mosaic_0001>

<llo_original>
// kernel: tpu_custom_call.1
$region0: #{tpu_custom_call.1}
  #allocation0 [shape = 'u32[]', space=smem, size = 0x4, offset = 0x4, fixed_abs, tag = 'smem constant byte address 0x4 - core index']
  #allocation1 [shape = 'u32[144,128]{1,0:T(1,128)}', space=vmem, size = 0x12000, scoped, tag = 'internal scratch']
  %s0 = inlined_call_operand.vmem [shape: f32[8,4], index: 0, kind: input, shape index: {}]
  %s1 = inlined_call_operand.vmem [shape: f32[8,4], index: 1, kind: input, shape index: {}]
  %s2 = inlined_call_operand.hbm [shape: f32[1,4,4], index: 2, kind: output, shape index: {0}]
  %s3 = inlined_call_operand.hbm [shape: f32[1,4,4], index: 3, kind: output, shape index: {1}]
  %s4 = inlined_call_operand.hbm [shape: f32[1,4,4], index: 4, kind: output, shape index: {2}]
  %s5 = inlined_call_operand.hbm [shape: f32[1,1,4], index: 5, kind: output, shape index: {3}]
  %s6 = inlined_call_operand.hbm [shape: f32[1,1,4], index: 6, kind: output, shape index: {4}]
  %7 = xla_tuple %s2, %s3, %s4, %s5, %s6
  %s8 = sld [smem:[#allocation0]]
  $region54: #{tpu_custom_call.1} parent=0
    _
  %s10 = ssub.s32 1, %s8
  %s11 = scalar_select 0, %s10, %s8
  $region1: #{tpu_custom_call.1} parent=0
    #allocation2 [shape = 'u8[2048]{0}', space=vmem, size = 0x800, scoped, tag = 'output window, operand 0, single buffered']
    #allocation3 [shape = 's32[1]{0}', space=sflag, size = 0x4, scoped, tag = 'scoped memory for tpu_custom_call.1']
    #allocation4 [shape = 'u8[2048]{0}', space=vmem, size = 0x800, scoped, tag = 'output window, operand 1, single buffered']
    #allocation5 [shape = 's32[1]{0}', space=sflag, size = 0x4, scoped, tag = 'scoped memory for tpu_custom_call.1']
    #allocation6 [shape = 'u8[2048]{0}', space=vmem, size = 0x800, scoped, tag = 'output window, operand 2, single buffered']
    #allocation7 [shape = 'u8[512]{0}', space=vmem, size = 0x400, scoped, tag = 'output window, operand 3, single buffered']
    #allocation8 [shape = 's32[1]{0}', space=sflag, size = 0x4, scoped, tag = 'scoped memory for tpu_custom_call.1']
    #allocation9 [shape = 'u8[512]{0}', space=vmem, size = 0x400, scoped, tag = 'output window, operand 4, single buffered']
    %12 = vsyncpa [#allocation3], 0
    %13 = vsyncpa [#allocation5], 0
    %14 = vsyncpa [#allocation8], 0
    // Predicated region
    $region2: #{tpu_custom_call.1} parent=1 // pred_check
      _
    $region3: #{tpu_custom_call.1} parent=1 // pred_check_branch
      %16 = sbr.rel (0) target = $region5
    $region4: #{tpu_custom_call.1} parent=1 // pred_region
      %s17 = sadd.s32 0, 0
      %p18 = scmp.lt.s32.totalorder %s17, 0
      %s19 = scalar_select %p18, %s17, 0
      %p20 = scmp.lt.s32.totalorder %s19, 0
      %s21 = scalar_select %p20, %s19, 0
      %s22 = smul.addr %s21, 8
      %s23 = scalar_lea.vmem %s0, %s22
      %s24 = sadd.s32 0, 0
      %p25 = scmp.lt.s32.totalorder %s24, 0
      %s26 = scalar_select %p25, %s24, 0
    $region5: #{tpu_custom_call.1} parent=1 // pred_fallthru
      _
    // Predicated region
    $region6: #{tpu_custom_call.1} parent=1 // pred_check
      _
    $region7: #{tpu_custom_call.1} parent=1 // pred_check_branch
      %28 = sbr.rel (0) target = $region9
    $region8: #{tpu_custom_call.1} parent=1 // pred_region
      %s29 = sadd.s32 0, 0
      %p30 = scmp.lt.s32.totalorder %s29, 0
      %s31 = scalar_select %p30, %s29, 0
      %p32 = scmp.lt.s32.totalorder %s31, 0
      %s33 = scalar_select %p32, %s31, 0
      %s34 = smul.addr %s33, 8
      %s35 = scalar_lea.vmem %s1, %s34
      %s36 = sadd.s32 0, 0
      %p37 = scmp.lt.s32.totalorder %s36, 0
      %s38 = scalar_select %p37, %s36, 0
    $region9: #{tpu_custom_call.1} parent=1 // pred_fallthru
      _
    %s39 = sadd.s32 0, 0
    %p40 = scmp.lt.s32.totalorder %s39, 0
    %s41 = scalar_select %p40, %s39, 0
    %p42 = scmp.lt.s32.totalorder %s41, 0
    %s43 = scalar_select %p42, %s41, 0
    %s44 = smul.addr %s43, 8
    %s45 = scalar_lea.vmem %s0, %s44
    %s46 = sadd.s32 0, 0
    %p47 = scmp.lt.s32.totalorder %s46, 0
    %s48 = scalar_select %p47, %s46, 0
    %p49 = scmp.lt.s32.totalorder %s48, 0
    %s50 = scalar_select %p49, %s48, 0
    %s51 = smul.addr %s50, 8
    %s52 = scalar_lea.vmem %s1, %s51
    %s53 = sadd.s32 0, 0
    %p54 = scmp.lt.s32.totalorder %s53, 0
    %s55 = scalar_select %p54, %s53, 0
    %p56 = scmp.lt.s32.totalorder %s55, 0
    %s57 = scalar_select %p56, %s55, 0
    %s58 = smul.addr %s57, 8
    %s59 = scalar_lea.vmem %s0, %s58
    %s60 = sadd.s32 0, 0
    %p61 = scmp.lt.s32.totalorder %s60, 0
    %s62 = scalar_select %p61, %s60, 0
    %s63 = sadd.s32 0, 0
    %p64 = scmp.lt.s32.totalorder %s63, 0
    %s65 = scalar_select %p64, %s63, 0
    %p66 = scmp.lt.s32.totalorder %s65, 0
    %s67 = scalar_select %p66, %s65, 0
    %s68 = smul.addr %s67, 8
    %s69 = scalar_lea.vmem %s1, %s68
    %s70 = sadd.s32 0, 0
    %p71 = scmp.lt.s32.totalorder %s70, 0
    %s72 = scalar_select %p71, %s70, 0
    %p73 = scmp.eq.s32.totalorder 0, 0
    // Predicated region
    $region10: #{tpu_custom_call.1} parent=1 // pred_check
      %p74 = pneg %p73
    $region11: #{tpu_custom_call.1} parent=1 // pred_check_branch
      %76 = sbr.rel (%p74) target = $region13
    $region12: #{tpu_custom_call.1} parent=1 // pred_region
      %vm77 = vcmask 27648
      %78 = vst.msk [vmem:[#allocation2] sm:$0xf] %vm77, 0.0
      %79 = vst.msk [vmem:[#allocation4] sm:$0xf] %vm77, 0.0
      %80 = vst.msk [vmem:[#allocation6] sm:$0xf] %vm77, 0.0
      %vm81 = vcmask 24576
      %82 = vst.msk [vmem:[#allocation7] sm:$0x1] %vm81, 0.0
      %83 = vst.msk [vmem:[#allocation9] sm:$0x1] %vm81, 0.0
    $region13: #{tpu_custom_call.1} parent=1 // pred_fallthru
      _
    %s84 = sadd.s32 0, 0
    %s85 = smul.u32 %s84, 8
    %s86 = ssub.s32 8, %s85
    %v87 = vlaneseq
    %v88 = vshrl.u32 %v87, 7
    %v89 = vstv %s86
    %vm90 = vcmp.lt.s32.totalorder %v88, %v89
    %v91 = vld [vmem:[%s59] sm:$0xff]
    %v92 = vld [vmem:[%s69] sm:$0xff]
    %v93 = vsel %vm90, %v91, 0.0
    %v94 = vsel %vm90, %v92, 0.0
    %v95 = vld [vmem:[#allocation2] sm:$0xf]
    %96 = vxpose.xlu0.b32.start [1/16] %v93, 128
    %97 = vxpose.xlu0.b32.cont [2/16] 0.0, 128
    %98 = vxpose.xlu0.b32.cont [3/16] 0.0, 128
    %99 = vxpose.xlu0.b32.cont [4/16] 0.0, 128
    %100 = vxpose.xlu0.b32.cont [5/16] 0.0, 128
    %101 = vxpose.xlu0.b32.cont [6/16] 0.0, 128
    %102 = vxpose.xlu0.b32.cont [7/16] 0.0, 128
    %103 = vxpose.xlu0.b32.cont [8/16] 0.0, 128
    %104 = vxpose.xlu0.b32.cont [9/16] 0.0, 128
    %105 = vxpose.xlu0.b32.cont [10/16] 0.0, 128
    %106 = vxpose.xlu0.b32.cont [11/16] 0.0, 128
    %107 = vxpose.xlu0.b32.cont [12/16] 0.0, 128
    %108 = vxpose.xlu0.b32.cont [13/16] 0.0, 128
    %109 = vxpose.xlu0.b32.cont [14/16] 0.0, 128
    %110 = vxpose.xlu0.b32.cont [15/16] 0.0, 128
    %111 = vxpose.xlu0.b32.end [16/16] 0.0, 128
    %v112 = vpop.trf.xlu0
    %v113 = vpop.trf.xlu0
    %v114 = vpop.trf.xlu0
    %v115 = vpop.trf.xlu0
    %v116 = vpop.trf.xlu0
    %v117 = vpop.trf.xlu0
    %v118 = vpop.trf.xlu0
    %v119 = vpop.trf.xlu0
    %v120 = vpop.trf.xlu0
    %v121 = vpop.trf.xlu0
    %v122 = vpop.trf.xlu0
    %v123 = vpop.trf.xlu0
    %v124 = vpop.trf.xlu0
    %v125 = vpop.trf.xlu0
    %v126 = vpop.trf.xlu0
    %v127 = vpop.trf.xlu0
    %vm128 = vcmask 64512
    %v130 = vsel %vm128, %v112, 0
    %132 = vmatprep.subr.mxu0 0.0
    %133 = vmatpush1.msra.mxu0 %v93
    %134 = vmatprep.subr.mxu0 0.0
    %135 = vmatpush1.msra.mxu0 0.0
    %136 = vmatprep.subr.mxu0 0.0
    %137 = vmatpush1.msra.mxu0 0.0
    %138 = vmatprep.subr.mxu0 0.0
    %139 = vmatpush1.msra.mxu0 0.0
    %140 = vmatprep.subr.mxu0 0.0
    %141 = vmatpush1.msra.mxu0 0.0
    %142 = vmatprep.subr.mxu0 0.0
    %143 = vmatpush1.msra.mxu0 0.0
    %144 = vmatprep.subr.mxu0 0.0
    %145 = vmatpush1.msra.mxu0 0.0
    %146 = vmatprep.subr.mxu0 0.0
    %147 = vmatpush1.msra.mxu0 0.0
    %148 = vmatprep.subr.mxu0 0.0
    %149 = vmatpush1.msra.mxu0 0.0
    %150 = vmatprep.subr.mxu0 0.0
    %151 = vmatpush1.msra.mxu0 0.0
    %152 = vmatprep.subr.mxu0 0.0
    %153 = vmatpush1.msra.mxu0 0.0
    %154 = vmatprep.subr.mxu0 0.0
    %155 = vmatpush1.msra.mxu0 0.0
    %156 = vmatprep.subr.mxu0 0.0
    %157 = vmatpush1.msra.mxu0 0.0
    %158 = vmatprep.subr.mxu0 0.0
    %159 = vmatpush1.msra.mxu0 0.0
    %160 = vmatprep.subr.mxu0 0.0
    %161 = vmatpush1.msra.mxu0 0.0
    %162 = vmatprep.subr.mxu0 0.0
    %163 = vmatpush1.msra.mxu0 0.0
    %164 = vmatprep.subr.mxu0 0.0
    %165 = vmatpush1.msra.mxu0 0.0
    %166 = vmatprep.subr.mxu0 0.0
    %167 = vmatpush1.msra.mxu0 0.0
    %168 = vmatprep.subr.mxu0 0.0
    %169 = vmatpush1.msra.mxu0 0.0
    %170 = vmatprep.subr.mxu0 0.0
    %171 = vmatpush1.msra.mxu0 0.0
    %172 = vmatprep.subr.mxu0 0.0
    %173 = vmatpush1.msra.mxu0 0.0
    %174 = vmatprep.subr.mxu0 0.0
    %175 = vmatpush1.msra.mxu0 0.0
    %176 = vmatprep.subr.mxu0 0.0
    %177 = vmatpush1.msra.mxu0 0.0
    %178 = vmatprep.subr.mxu0 0.0
    %179 = vmatpush1.msra.mxu0 0.0
    %180 = vmatprep.subr.mxu0 0.0
    %181 = vmatpush1.msra.mxu0 0.0
    %182 = vmatprep.subr.mxu0 0.0
    %183 = vmatpush1.msra.mxu0 0.0
    %184 = vmatprep.subr.mxu0 0.0
    %185 = vmatpush1.msra.mxu0 0.0
    %186 = vmatprep.subr.mxu0 0.0
    %187 = vmatpush1.msra.mxu0 0.0
    %188 = vmatprep.subr.mxu0 0.0
    %189 = vmatpush1.msra.mxu0 0.0
    %190 = vmatprep.subr.mxu0 0.0
    %191 = vmatpush1.msra.mxu0 0.0
    %192 = vmatprep.subr.mxu0 0.0
    %193 = vmatpush1.msra.mxu0 0.0
    %194 = vmatprep.subr.mxu0 0.0
    %195 = vmatpush1.msra.mxu0 0.0
    %196 = vmatprep.mubr.f32.mxu0 0.0
    %197 = vmatmul.mubr.f32.gmra.mrb[0].mxu0 %v130
    %v198 = vpop.f32.mrb[0].mxu0
    %v199 = vadd.f32 0.0, %v198
    %v200 = vpop.f32.mrb[0].mxu0
    %201 = vdwg.mxu0
    %v202 = vadd.f32 %v95, %v199
    %vm203 = vcmask 27648
    %204 = vst.msk [vmem:[#allocation2] sm:$0xf] %vm203, %v202
    %v205 = vld [vmem:[#allocation4] sm:$0xf]
    %206 = vmatprep.subr.mxu0 0.0
    %207 = vmatpush1.msra.mxu0 %v94
    %208 = vmatprep.subr.mxu0 0.0
    %209 = vmatpush1.msra.mxu0 0.0
    %210 = vmatprep.subr.mxu0 0.0
    %211 = vmatpush1.msra.mxu0 0.0
    %212 = vmatprep.subr.mxu0 0.0
    %213 = vmatpush1.msra.mxu0 0.0
    %214 = vmatprep.subr.mxu0 0.0
    %215 = vmatpush1.msra.mxu0 0.0
    %216 = vmatprep.subr.mxu0 0.0
    %217 = vmatpush1.msra.mxu0 0.0
    %218 = vmatprep.subr.mxu0 0.0
    %219 = vmatpush1.msra.mxu0 0.0
    %220 = vmatprep.subr.mxu0 0.0
    %221 = vmatpush1.msra.mxu0 0.0
    %222 = vmatprep.subr.mxu0 0.0
    %223 = vmatpush1.msra.mxu0 0.0
    %224 = vmatprep.subr.mxu0 0.0
    %225 = vmatpush1.msra.mxu0 0.0
    %226 = vmatprep.subr.mxu0 0.0
    %227 = vmatpush1.msra.mxu0 0.0
    %228 = vmatprep.subr.mxu0 0.0
    %229 = vmatpush1.msra.mxu0 0.0
    %230 = vmatprep.subr.mxu0 0.0
    %231 = vmatpush1.msra.mxu0 0.0
    %232 = vmatprep.subr.mxu0 0.0
    %233 = vmatpush1.msra.mxu0 0.0
    %234 = vmatprep.subr.mxu0 0.0
    %235 = vmatpush1.msra.mxu0 0.0
    %236 = vmatprep.subr.mxu0 0.0
    %237 = vmatpush1.msra.mxu0 0.0
    %238 = vmatprep.subr.mxu0 0.0
    %239 = vmatpush1.msra.mxu0 0.0
    %240 = vmatprep.subr.mxu0 0.0
    %241 = vmatpush1.msra.mxu0 0.0
    %242 = vmatprep.subr.mxu0 0.0
    %243 = vmatpush1.msra.mxu0 0.0
    %244 = vmatprep.subr.mxu0 0.0
    %245 = vmatpush1.msra.mxu0 0.0
    %246 = vmatprep.subr.mxu0 0.0
    %247 = vmatpush1.msra.mxu0 0.0
    %248 = vmatprep.subr.mxu0 0.0
    %249 = vmatpush1.msra.mxu0 0.0
    %250 = vmatprep.subr.mxu0 0.0
    %251 = vmatpush1.msra.mxu0 0.0
    %252 = vmatprep.subr.mxu0 0.0
    %253 = vmatpush1.msra.mxu0 0.0
    %254 = vmatprep.subr.mxu0 0.0
    %255 = vmatpush1.msra.mxu0 0.0
    %256 = vmatprep.subr.mxu0 0.0
    %257 = vmatpush1.msra.mxu0 0.0
    %258 = vmatprep.subr.mxu0 0.0
    %259 = vmatpush1.msra.mxu0 0.0
    %260 = vmatprep.subr.mxu0 0.0
    %261 = vmatpush1.msra.mxu0 0.0
    %262 = vmatprep.subr.mxu0 0.0
    %263 = vmatpush1.msra.mxu0 0.0
    %264 = vmatprep.subr.mxu0 0.0
    %265 = vmatpush1.msra.mxu0 0.0
    %266 = vmatprep.subr.mxu0 0.0
    %267 = vmatpush1.msra.mxu0 0.0
    %268 = vmatprep.subr.mxu0 0.0
    %269 = vmatpush1.msra.mxu0 0.0
    %270 = vmatprep.mubr.f32.mxu0 0.0
    %271 = vmatmul.mubr.f32.gmra.mrb[0].mxu0 %v130
    %v272 = vpop.f32.mrb[0].mxu0
    %v273 = vadd.f32 0.0, %v272
    %v274 = vpop.f32.mrb[0].mxu0
    %275 = vdwg.mxu0
    %v276 = vadd.f32 %v205, %v273
    %277 = vst.msk [vmem:[#allocation4] sm:$0xf] %vm203, %v276
    %v278 = vld [vmem:[#allocation6] sm:$0xf]
    %279 = vxpose.xlu0.b32.start [1/16] %v94, 128
    %280 = vxpose.xlu0.b32.cont [2/16] 0.0, 128
    %281 = vxpose.xlu0.b32.cont [3/16] 0.0, 128
    %282 = vxpose.xlu0.b32.cont [4/16] 0.0, 128
    %283 = vxpose.xlu0.b32.cont [5/16] 0.0, 128
    %284 = vxpose.xlu0.b32.cont [6/16] 0.0, 128
    %285 = vxpose.xlu0.b32.cont [7/16] 0.0, 128
    %286 = vxpose.xlu0.b32.cont [8/16] 0.0, 128
    %287 = vxpose.xlu0.b32.cont [9/16] 0.0, 128
    %288 = vxpose.xlu0.b32.cont [10/16] 0.0, 128
    %289 = vxpose.xlu0.b32.cont [11/16] 0.0, 128
    %290 = vxpose.xlu0.b32.cont [12/16] 0.0, 128
    %291 = vxpose.xlu0.b32.cont [13/16] 0.0, 128
    %292 = vxpose.xlu0.b32.cont [14/16] 0.0, 128
    %293 = vxpose.xlu0.b32.cont [15/16] 0.0, 128
    %294 = vxpose.xlu0.b32.end [16/16] 0.0, 128
    %v295 = vpop.trf.xlu0
    %v296 = vpop.trf.xlu0
    %v297 = vpop.trf.xlu0
    %v298 = vpop.trf.xlu0
    %v299 = vpop.trf.xlu0
    %v300 = vpop.trf.xlu0
    %v301 = vpop.trf.xlu0
    %v302 = vpop.trf.xlu0
    %v303 = vpop.trf.xlu0
    %v304 = vpop.trf.xlu0
    %v305 = vpop.trf.xlu0
    %v306 = vpop.trf.xlu0
    %v307 = vpop.trf.xlu0
    %v308 = vpop.trf.xlu0
    %v309 = vpop.trf.xlu0
    %v310 = vpop.trf.xlu0
    %v312 = vsel %vm128, %v295, 0
    %314 = vmatprep.subr.mxu0 0.0
    %315 = vmatpush1.msra.mxu0 %v94
    %316 = vmatprep.subr.mxu0 0.0
    %317 = vmatpush1.msra.mxu0 0.0
    %318 = vmatprep.subr.mxu0 0.0
    %319 = vmatpush1.msra.mxu0 0.0
    %320 = vmatprep.subr.mxu0 0.0
    %321 = vmatpush1.msra.mxu0 0.0
    %322 = vmatprep.subr.mxu0 0.0
    %323 = vmatpush1.msra.mxu0 0.0
    %324 = vmatprep.subr.mxu0 0.0
    %325 = vmatpush1.msra.mxu0 0.0
    %326 = vmatprep.subr.mxu0 0.0
    %327 = vmatpush1.msra.mxu0 0.0
    %328 = vmatprep.subr.mxu0 0.0
    %329 = vmatpush1.msra.mxu0 0.0
    %330 = vmatprep.subr.mxu0 0.0
    %331 = vmatpush1.msra.mxu0 0.0
    %332 = vmatprep.subr.mxu0 0.0
    %333 = vmatpush1.msra.mxu0 0.0
    %334 = vmatprep.subr.mxu0 0.0
    %335 = vmatpush1.msra.mxu0 0.0
    %336 = vmatprep.subr.mxu0 0.0
    %337 = vmatpush1.msra.mxu0 0.0
    %338 = vmatprep.subr.mxu0 0.0
    %339 = vmatpush1.msra.mxu0 0.0
    %340 = vmatprep.subr.mxu0 0.0
    %341 = vmatpush1.msra.mxu0 0.0
    %342 = vmatprep.subr.mxu0 0.0
    %343 = vmatpush1.msra.mxu0 0.0
    %344 = vmatprep.subr.mxu0 0.0
    %345 = vmatpush1.msra.mxu0 0.0
    %346 = vmatprep.subr.mxu0 0.0
    %347 = vmatpush1.msra.mxu0 0.0
    %348 = vmatprep.subr.mxu0 0.0
    %349 = vmatpush1.msra.mxu0 0.0
    %350 = vmatprep.subr.mxu0 0.0
    %351 = vmatpush1.msra.mxu0 0.0
    %352 = vmatprep.subr.mxu0 0.0
    %353 = vmatpush1.msra.mxu0 0.0
    %354 = vmatprep.subr.mxu0 0.0
    %355 = vmatpush1.msra.mxu0 0.0
    %356 = vmatprep.subr.mxu0 0.0
    %357 = vmatpush1.msra.mxu0 0.0
    %358 = vmatprep.subr.mxu0 0.0
    %359 = vmatpush1.msra.mxu0 0.0
    %360 = vmatprep.subr.mxu0 0.0
    %361 = vmatpush1.msra.mxu0 0.0
    %362 = vmatprep.subr.mxu0 0.0
    %363 = vmatpush1.msra.mxu0 0.0
    %364 = vmatprep.subr.mxu0 0.0
    %365 = vmatpush1.msra.mxu0 0.0
    %366 = vmatprep.subr.mxu0 0.0
    %367 = vmatpush1.msra.mxu0 0.0
    %368 = vmatprep.subr.mxu0 0.0
    %369 = vmatpush1.msra.mxu0 0.0
    %370 = vmatprep.subr.mxu0 0.0
    %371 = vmatpush1.msra.mxu0 0.0
    %372 = vmatprep.subr.mxu0 0.0
    %373 = vmatpush1.msra.mxu0 0.0
    %374 = vmatprep.subr.mxu0 0.0
    %375 = vmatpush1.msra.mxu0 0.0
    %376 = vmatprep.subr.mxu0 0.0
    %377 = vmatpush1.msra.mxu0 0.0
    %378 = vmatprep.mubr.f32.mxu0 0.0
    %379 = vmatmul.mubr.f32.gmra.mrb[0].mxu0 %v312
    %v380 = vpop.f32.mrb[0].mxu0
    %v381 = vadd.f32 0.0, %v380
    %v382 = vpop.f32.mrb[0].mxu0
    %383 = vdwg.mxu0
    %v384 = vadd.f32 %v278, %v381
    %385 = vst.msk [vmem:[#allocation6] sm:$0xf] %vm203, %v384
    %v386 = vld [vmem:[#allocation7] sm:$0x1]
    %vm387 = vcmask 31744
    %v388 = vsel %vm387, %v93, 0.0
    %v389 = vrot.slane %v388, 4
    %v390 = vadd.f32 %v388, %v389
    %v391 = vrot.slane %v390, 2
    %v392 = vadd.f32 %v390, %v391
    %v393 = vrot.slane %v392, 1
    %v394 = vadd.f32 %v392, %v393
    %v395 = vadd.f32 %v386, %v394
    %vm396 = vcmask 24576
    %397 = vst.msk [vmem:[#allocation7] sm:$0x1] %vm396, %v395
    %v398 = vld [vmem:[#allocation9] sm:$0x1]
    %v399 = vsel %vm387, %v94, 0.0
    %v400 = vrot.slane %v399, 4
    %v401 = vadd.f32 %v399, %v400
    %v402 = vrot.slane %v401, 2
    %v403 = vadd.f32 %v401, %v402
    %v404 = vrot.slane %v403, 1
    %v405 = vadd.f32 %v403, %v404
    %v406 = vadd.f32 %v398, %v405
    %407 = vst.msk [vmem:[#allocation9] sm:$0x1] %vm396, %v406
    // Predicated region
    $region14: #{tpu_custom_call.1} parent=1 // pred_check
      _
    $region15: #{tpu_custom_call.1} parent=1 // pred_check_branch
      %409 = sbr.rel (0) target = $region17
    $region16: #{tpu_custom_call.1} parent=1 // pred_region
      %s411 = ssub.s32 64, 64
      %412 = vsyncadd [#allocation3], %s411
      %s414 = sshll.u32 [#allocation2], 4
      %s415 = int_to_ptr.vmem [resolvable:$true] %s414
      %417 = dma.vmem_to_hbm [thread:$0]  %s415, 64, %s2, [#allocation3]
    $region17: #{tpu_custom_call.1} parent=1 // pred_fallthru
      _
    // Predicated region
    $region18: #{tpu_custom_call.1} parent=1 // pred_check
      _
    $region19: #{tpu_custom_call.1} parent=1 // pred_check_branch
      %419 = sbr.rel (0) target = $region21
    $region20: #{tpu_custom_call.1} parent=1 // pred_region
      %s421 = ssub.s32 64, 64
      %422 = vsyncadd [#allocation5], %s421
      %s424 = sshll.u32 [#allocation4], 4
      %s425 = int_to_ptr.vmem [resolvable:$true] %s424
      %427 = dma.vmem_to_hbm [thread:$0]  %s425, 64, %s3, [#allocation5]
    $region21: #{tpu_custom_call.1} parent=1 // pred_fallthru
      _
    // Predicated region
    $region22: #{tpu_custom_call.1} parent=1 // pred_check
      _
    $region23: #{tpu_custom_call.1} parent=1 // pred_check_branch
      %429 = sbr.rel (0) target = $region25
    $region24: #{tpu_custom_call.1} parent=1 // pred_region
      %s431 = ssub.s32 64, 64
      %432 = vsyncadd [#allocation5], %s431
      %s434 = sshll.u32 [#allocation6], 4
      %s435 = int_to_ptr.vmem [resolvable:$true] %s434
      %437 = dma.vmem_to_hbm [thread:$0]  %s435, 64, %s4, [#allocation5]
    $region25: #{tpu_custom_call.1} parent=1 // pred_fallthru
      _
    // Predicated region
    $region26: #{tpu_custom_call.1} parent=1 // pred_check
      _
    $region27: #{tpu_custom_call.1} parent=1 // pred_check_branch
      %439 = sbr.rel (0) target = $region29
    $region28: #{tpu_custom_call.1} parent=1 // pred_region
      %s441 = ssub.s32 16, 16
      %442 = vsyncadd [#allocation8], %s441
      %s444 = sshll.u32 [#allocation7], 4
      %s445 = int_to_ptr.vmem [resolvable:$true] %s444
      %447 = dma.vmem_to_hbm [thread:$0]  %s445, 16, %s5, [#allocation8]
    $region29: #{tpu_custom_call.1} parent=1 // pred_fallthru
      _
    // Predicated region
    $region30: #{tpu_custom_call.1} parent=1 // pred_check
      _
    $region31: #{tpu_custom_call.1} parent=1 // pred_check_branch
      %449 = sbr.rel (0) target = $region33
    $region32: #{tpu_custom_call.1} parent=1 // pred_region
      %s451 = ssub.s32 16, 16
      %452 = vsyncadd [#allocation8], %s451
      %s454 = sshll.u32 [#allocation9], 4
      %s455 = int_to_ptr.vmem [resolvable:$true] %s454
      %457 = dma.vmem_to_hbm [thread:$0]  %s455, 16, %s6, [#allocation8]
    $region33: #{tpu_custom_call.1} parent=1 // pred_fallthru
      _
    // Predicated region
    $region34: #{tpu_custom_call.1} parent=1 // pred_check
      _
    $region35: #{tpu_custom_call.1} parent=1 // pred_check_branch
      %459 = sbr.rel (0) target = $region37
    $region36: #{tpu_custom_call.1} parent=1 // pred_region
      %460 = dma.done [#allocation3], 64
    $region37: #{tpu_custom_call.1} parent=1 // pred_fallthru
      _
    // Predicated region
    $region38: #{tpu_custom_call.1} parent=1 // pred_check
      _
    $region39: #{tpu_custom_call.1} parent=1 // pred_check_branch
      %462 = sbr.rel (0) target = $region41
    $region40: #{tpu_custom_call.1} parent=1 // pred_region
      %463 = dma.done [#allocation5], 64
    $region41: #{tpu_custom_call.1} parent=1 // pred_fallthru
      _
    // Predicated region
    $region42: #{tpu_custom_call.1} parent=1 // pred_check
      _
    $region43: #{tpu_custom_call.1} parent=1 // pred_check_branch
      %465 = sbr.rel (0) target = $region45
    $region44: #{tpu_custom_call.1} parent=1 // pred_region
      %466 = dma.done [#allocation5], 64
    $region45: #{tpu_custom_call.1} parent=1 // pred_fallthru
      _
    // Predicated region
    $region46: #{tpu_custom_call.1} parent=1 // pred_check
      _
    $region47: #{tpu_custom_call.1} parent=1 // pred_check_branch
      %468 = sbr.rel (0) target = $region49
    $region48: #{tpu_custom_call.1} parent=1 // pred_region
      %469 = dma.done [#allocation8], 16
    $region49: #{tpu_custom_call.1} parent=1 // pred_fallthru
      _
    // Predicated region
    $region50: #{tpu_custom_call.1} parent=1 // pred_check
      _
    $region51: #{tpu_custom_call.1} parent=1 // pred_check_branch
      %471 = sbr.rel (0) target = $region53
    $region52: #{tpu_custom_call.1} parent=1 // pred_region
      %472 = dma.done [#allocation8], 16
    $region53: #{tpu_custom_call.1} parent=1 // pred_fallthru
      _
    %473 = vsyncpa [#allocation3], 1
    %474 = vsyncpa [#allocation5], 1
    %475 = vsyncpa [#allocation8], 1

</llo_original>
